<compile_context>
chip_gen: v5e
topology: v5e:2x2
jax: 0.10.0
libtpu: 0.0.40
codegen_flags: <defaults>
</compile_context>

<pallas_src>
import functools

import jax
import jax.numpy as jnp
from jax.experimental import pallas as pl
from jax.experimental.pallas import tpu as pltpu

CONST = 0.3            # matches nn.Module default const=0.3
_NEUTRAL_DIST = 1e4    # softplus(-(const + 1e4) * 1) == 0.0 exactly in f32


def _wsm_kernel(d_ref, y_ref, out_ref, acc_ref, *,
                const, inv_total, block_rows, cols,
                T, n_blocks, valid_last_rows, has_skip):
    p = pl.program_id(0)          # 2-way core split (parallel on v7x)
    t = pl.program_id(1)          # sequential reduction axis
    b = p * T + t                 # logical row-block id (may be == n_blocks once)

    @pl.when(t == 0)
    def _():
        acc_ref[...] = jnp.zeros_like(acc_ref)

    # Widen to f32 inside the kernel (inputs may be bf16/f16 in HBM).
    d = d_ref[...].astype(jnp.float32)
    lbl = y_ref[...].astype(jnp.float32)
    x = -(const + d) * lbl
    # Stable softplus: log(1 + exp(x)) = max(x, 0) + log(1 + exp(-|x|)).
    term = jnp.maximum(x, 0.0) + jnp.log(1.0 + jnp.exp(-jnp.abs(x)))

    groups = block_rows // 8

    def accumulate(v):
        # Fold sublane groups of 8 (vreg-aligned, pure VPU adds) into the
        # small (8, cols) accumulator -- no full-tile acc read/write per step.
        if groups == 1:
            acc_ref[...] += v
        else:
            acc_ref[...] += v.reshape(groups, 8, cols).sum(axis=0)

    ragged = valid_last_rows != block_rows        # static Python bool
    if ragged:
        # Only the single ragged last block pays for the row mask; garbage
        # rows may produce inf/NaN in `term`, jnp.where selects 0.0 for them.
        @pl.when(b == n_blocks - 1)
        def _():
            r = jax.lax.broadcasted_iota(jnp.int32, (block_rows, cols), 0)
            accumulate(jnp.where(r < valid_last_rows, term, 0.0))

        @pl.when(b < n_blocks - 1)
        def _():
            accumulate(term)
    elif has_skip:
        # Odd block count with an exact last block: just skip the extra cell.
        @pl.when(b < n_blocks)
        def _():
            accumulate(term)
    else:
        accumulate(term)

    @pl.when(t == pl.num_programs(1) - 1)
    def _():
        s = jnp.sum(acc_ref[...]) * inv_total
        out_ref[...] = s.reshape(1, 1, 1)


def weighted_softmargin_loss(dist, y, const=CONST, *,
                             target_block_bytes=4 * 1024 * 1024):
    """dist, y: arrays of identical shape. Returns scalar f32 mean loss."""
    assert dist.shape == y.shape, (dist.shape, y.shape)
    if not jnp.issubdtype(dist.dtype, jnp.floating):
        dist = dist.astype(jnp.float32)
    if not jnp.issubdtype(y.dtype, jnp.floating):
        y = y.astype(jnp.float32)

    total = int(dist.size)
    assert total > 0

    # Lane-dense width: prefer one that divides the element count so no
    # host-side pad/copy is needed in the common case.
    cols = 128
    for c in (512, 256, 128):
        if total % c == 0:
            cols = c
            break

    rows = max(-(-total // cols), 8)        # at least 8 sublanes
    padded_total = rows * cols

    d_flat = dist.reshape(-1)
    y_flat = y.reshape(-1)
    if padded_total != total:
        pad = padded_total - total
        # Neutral padding: term is exactly 0, so no in-kernel mask needed for
        # the flat tail (and no flat-index math at all).
        d_flat = jnp.pad(d_flat, (0, pad), constant_values=_NEUTRAL_DIST)
        y_flat = jnp.pad(y_flat, (0, pad), constant_values=1.0)
    d2 = d_flat.reshape(rows, cols)
    y2 = y_flat.reshape(rows, cols)

    # ~4 MiB per input per buffer (in the input dtype): 2 inputs x 2 buffers
    # ~= 16 MiB, plus a tiny (8, cols) f32 accumulator. Safe on v5e/v6e
    # (128 MiB physical VMEM) and v7x (64 MiB) with the explicit limit below.
    d_item = jnp.dtype(d2.dtype).itemsize
    y_item = jnp.dtype(y2.dtype).itemsize
    itemsize = max(d_item, y_item)
    block_rows = max(8, (target_block_bytes // (cols * itemsize)) // 8 * 8)
    block_rows = min(block_rows, (rows // 8) * 8)   # never taller than the array

    n_blocks = -(-rows // block_rows)
    valid_last_rows = rows - (n_blocks - 1) * block_rows  # == block_rows iff exact

    # Always split 2 ways when there is more than one block so v7x's two
    # TensorCores each stream half the data (harmless serialization on 1-TC
    # chips).  An odd block count leaves one unused grid cell: clamp its block
    # index (refetch last block) and skip its accumulation in-kernel.
    P = 2 if n_blocks >= 2 else 1
    T = -(-n_blocks // P)
    has_skip = (P * T != n_blocks)

    if has_skip:
        def in_map(p, t):
            b = p * T + t
            return (b - b // n_blocks, 0)   # maps the single OOB cell to the last block
    else:
        def in_map(p, t):
            return (p * T + t, 0)

    kernel = functools.partial(
        _wsm_kernel, const=float(const), inv_total=1.0 / total,
        block_rows=block_rows, cols=cols, T=T, n_blocks=n_blocks,
        valid_last_rows=valid_last_rows, has_skip=has_skip)

    buf_bytes = 2 * block_rows * cols * (d_item + y_item)   # double-buffered inputs
    vmem_limit = int(min(56 << 20, max(32 << 20, buf_bytes + (24 << 20))))

    out = pl.pallas_call(
        kernel,
        out_shape=jax.ShapeDtypeStruct((P, 1, 1), jnp.float32),
        grid_spec=pltpu.PrefetchScalarGridSpec(
            num_scalar_prefetch=0,
            grid=(P, T),
            in_specs=[
                pl.BlockSpec((block_rows, cols), in_map),
                pl.BlockSpec((block_rows, cols), in_map),
            ],
            out_specs=pl.BlockSpec((1, 1, 1), lambda p, t: (p, 0, 0)),
            scratch_shapes=[pltpu.VMEM((8, cols), jnp.float32)],
        ),
        compiler_params=pltpu.CompilerParams(
            dimension_semantics=("parallel", "arbitrary"),
            vmem_limit_bytes=vmem_limit),
    )(d2, y2)

    # Sum the per-core partial means (each already divided by `total`).
    return jnp.sum(out)


if __name__ == "__main__":
    key = jax.random.PRNGKey(0)
    ks = jax.random.split(key, 8)

    def ref_loss(d, y):
        d32 = d.astype(jnp.float32)
        y32 = y.astype(jnp.float32)
        return jnp.mean(jnp.log(1.0 + jnp.exp(-(CONST + d32) * y32)))

    def check(d, y, **kw):
        got = jax.block_until_ready(weighted_softmargin_loss(d, y, **kw))
        want = ref_loss(d, y)
        assert jnp.allclose(got, want, rtol=1e-4, atol=1e-6), (got, want)

    # Case 1: small batch of pairwise distances with +/-1 labels.
    d1 = jax.random.uniform(ks[0], (2, 64), dtype=jnp.float32) * 2.0
    y1 = jnp.where(jax.random.bernoulli(ks[1], 0.5, (2, 64)), 1.0, -1.0).astype(jnp.float32)
    check(d1, y1)

    # Case 2: element count not a multiple of 128 -> neutral-padding path.
    d2 = jax.random.uniform(ks[2], (3, 50), dtype=jnp.float32) * 2.0
    y2 = jnp.where(jax.random.bernoulli(ks[3], 0.5, (3, 50)), 1.0, -1.0).astype(jnp.float32)
    check(d2, y2)

    # Case 3: force tiny blocks -> odd block count: exercises the 2-way core
    # split with the clamped/skipped extra grid cell and the gated row mask.
    d3 = jax.random.uniform(ks[4], (19, 128), dtype=jnp.float32) * 2.0
    y3 = jnp.where(jax.random.bernoulli(ks[5], 0.5, (19, 128)), 1.0, -1.0).astype(jnp.float32)
    check(d3, y3, target_block_bytes=8 * 128 * 4)

    # Case 4: bf16 inputs stay bf16 in HBM; exercises the group-fold (>1) path.
    d4 = (jax.random.uniform(ks[6], (19, 128), dtype=jnp.float32) * 2.0).astype(jnp.bfloat16)
    y4 = jnp.where(jax.random.bernoulli(ks[7], 0.5, (19, 128)), 1.0, -1.0).astype(jnp.bfloat16)
    check(d4, y4, target_block_bytes=8 * 128 * 4)

    print("KERNEL_OK")
</pallas_src>

<mosaic_0001>
module attributes {stable_mosaic.version = 11 : i64} {
  func.func @_wsm_kernel(%arg0: i32, %arg1: i32, %arg2: memref<8x128xf32, #tpu.memory_space<vmem>>, %arg3: memref<8x128xf32, #tpu.memory_space<vmem>>, %arg4: memref<1x1x1xf32, #tpu.memory_space<vmem>>, %arg5: memref<8x128xf32, #tpu.memory_space<vmem>>) attributes {dimension_semantics = [#tpu.dimension_semantics<parallel>, #tpu.dimension_semantics<arbitrary>], iteration_bounds = array<i64: 1, 1>, scalar_prefetch = 0 : i64, scratch_operands = 1 : i64, tpu.core_type = #tpu.core_type<tc>, window_params = [{transform_indices = @transform_0, window_bounds = array<i64: 8, 128>}, {transform_indices = @transform_1, window_bounds = array<i64: 8, 128>}, {transform_indices = @transform_2, window_bounds = array<i64: 1, 1, 1>}]} {
    %c0_i32 = arith.constant 0 : i32
    %0 = arith.cmpi eq, %arg1, %c0_i32 : i32
    %1 = arith.extui %0 : i1 to i32
    %c0_i32_0 = arith.constant 0 : i32
    %2 = arith.cmpi ne, %1, %c0_i32_0 : i32
    scf.if %2 {
      %cst_14 = arith.constant 0.000000e+00 : f32
      %26 = vector.broadcast %cst_14 : f32 to vector<8x128xf32>
      %c0_15 = arith.constant 0 : index
      %c0_16 = arith.constant 0 : index
      %27 = vector.load %arg5[%c0_15, %c0_16] : memref<8x128xf32, #tpu.memory_space<vmem>>, vector<8x128xf32>
      tpu.vector_store %arg5[%c0_15, %c0_16], %26 {strides = array<i32>} : memref<8x128xf32, #tpu.memory_space<vmem>>, vector<8x128xf32>,
    } else {
    }
    %c0 = arith.constant 0 : index
    %c0_1 = arith.constant 0 : index
    %3 = vector.load %arg2[%c0, %c0_1] : memref<8x128xf32, #tpu.memory_space<vmem>>, vector<8x128xf32>
    %c0_2 = arith.constant 0 : index
    %c0_3 = arith.constant 0 : index
    %4 = vector.load %arg3[%c0_2, %c0_3] : memref<8x128xf32, #tpu.memory_space<vmem>>, vector<8x128xf32>
    %cst = arith.constant 3.000000e-01 : f32
    %5 = vector.broadcast %cst : f32 to vector<8x128xf32>
    %6 = arith.addf %5, %3 : vector<8x128xf32>
    %cst_4 = arith.constant 0.000000e+00 : f32
    %7 = vector.broadcast %cst_4 : f32 to vector<8x128xf32>
    %8 = arith.subf %7, %6 : vector<8x128xf32>
    %9 = arith.mulf %8, %4 : vector<8x128xf32>
    %cst_5 = arith.constant 0.000000e+00 : f32
    %10 = vector.broadcast %cst_5 : f32 to vector<8x128xf32>
    %11 = arith.maximumf %9, %10 : vector<8x128xf32>
    %12 = math.absf %9 : vector<8x128xf32>
    %cst_6 = arith.constant 0.000000e+00 : f32
    %13 = vector.broadcast %cst_6 : f32 to vector<8x128xf32>
    %14 = arith.subf %13, %12 : vector<8x128xf32>
    %15 = math.exp %14 : vector<8x128xf32>
    %cst_7 = arith.constant 1.000000e+00 : f32
    %16 = vector.broadcast %cst_7 : f32 to vector<8x128xf32>
    %17 = arith.addf %16, %15 : vector<8x128xf32>
    %18 = math.log %17 : vector<8x128xf32>
    %19 = arith.addf %11, %18 : vector<8x128xf32>
    %c0_8 = arith.constant 0 : index
    %c0_9 = arith.constant 0 : index
    %20 = vector.load %arg5[%c0_8, %c0_9] : memref<8x128xf32, #tpu.memory_space<vmem>>, vector<8x128xf32>
    %21 = arith.addf %20, %19 : vector<8x128xf32>
    %c0_10 = arith.constant 0 : index
    %c0_11 = arith.constant 0 : index
    %22 = vector.load %arg5[%c0_10, %c0_11] : memref<8x128xf32, #tpu.memory_space<vmem>>, vector<8x128xf32>
    tpu.vector_store %arg5[%c0_10, %c0_11], %21 {strides = array<i32>} : memref<8x128xf32, #tpu.memory_space<vmem>>, vector<8x128xf32>,
    %c0_i32_12 = arith.constant 0 : i32
    %23 = arith.cmpi eq, %arg1, %c0_i32_12 : i32
    %24 = arith.extui %23 : i1 to i32
    %c0_i32_13 = arith.constant 0 : i32
    %25 = arith.cmpi ne, %24, %c0_i32_13 : i32
    scf.if %25 {
      %c0_14 = arith.constant 0 : index
      %c0_15 = arith.constant 0 : index
      %26 = vector.load %arg5[%c0_14, %c0_15] : memref<8x128xf32, #tpu.memory_space<vmem>>, vector<8x128xf32>
      %27 = vector.shape_cast %26 : vector<8x128xf32> to vector<1x8x128xf32>
      %cst_16 = arith.constant dense<0.000000e+00> : vector<1xf32>
      %28 = vector.multi_reduction <add>, %27, %cst_16 [1, 2] : vector<1x8x128xf32> to vector<1xf32>
      %29 = vector.shape_cast %28 : vector<1xf32> to vector<1x1x1xf32>
      %30 = vector.extract %29[0, 0, 0] : f32 from vector<1x1x1xf32>
      %cst_17 = arith.constant 7.812500e-03 : f32
      %31 = arith.mulf %30, %cst_17 : f32
      %32 = vector.broadcast %31 : f32 to vector<1x1x1xf32>
      %c0_18 = arith.constant 0 : index
      %c0_19 = arith.constant 0 : index
      %c0_20 = arith.constant 0 : index
      %33 = vector.load %arg4[%c0_18, %c0_19, %c0_20] : memref<1x1x1xf32, #tpu.memory_space<vmem>>, vector<1x1x1xf32>
      tpu.vector_store %arg4[%c0_18, %c0_19, %c0_20], %32 {strides = array<i32>} : memref<1x1x1xf32, #tpu.memory_space<vmem>>, vector<1x1x1xf32>,
    } else {
    }
    return
  }
  func.func @transform_0(%arg0: i32, %arg1: i32) -> (i32, i32) {
    %c1_i32 = arith.constant 1 : i32
    %0 = arith.muli %arg0, %c1_i32 : i32
    %1 = arith.addi %0, %arg1 : i32
    %c0_i32 = arith.constant 0 : i32
    %c0_i32_0 = arith.constant 0 : i32
    return %1, %c0_i32 : i32, i32
  }
  func.func @transform_1(%arg0: i32, %arg1: i32) -> (i32, i32) {
    %c1_i32 = arith.constant 1 : i32
    %0 = arith.muli %arg0, %c1_i32 : i32
    %1 = arith.addi %0, %arg1 : i32
    %c0_i32 = arith.constant 0 : i32
    %c0_i32_0 = arith.constant 0 : i32
    return %1, %c0_i32 : i32, i32
  }
  func.func @transform_2(%arg0: i32, %arg1: i32) -> (i32, i32, i32) {
    %c0_i32 = arith.constant 0 : i32
    %c0_i32_0 = arith.constant 0 : i32
    %c0_i32_1 = arith.constant 0 : i32
    return %arg0, %c0_i32, %c0_i32_0 : i32, i32, i32
  }
}

</mosaic_0001>

<llo_original>
// kernel: tpu_custom_call.1
$region0: #{tpu_custom_call.1}
  #allocation0 [shape = 'u32[]', space=smem, size = 0x4, offset = 0x4, fixed_abs, tag = 'smem constant byte address 0x4 - core index']
  #allocation1 [shape = 'u32[72,128]{1,0:T(1,128)}', space=vmem, size = 0x9000, scoped, tag = 'internal scratch']
  #allocation2 [shape = 'f32[8,128]{1,0:T(8,128)}', space=vmem, size = 0x1000, scoped, tag = 'scratch operand']
  %s0 = inlined_call_operand.hbm [shape: f32[8,128], index: 0, kind: input, shape index: {}]
  %s1 = inlined_call_operand.hbm [shape: f32[8,128], index: 1, kind: input, shape index: {}]
  %s2 = inlined_call_operand.hbm [shape: f32[1,1,1], index: 2, kind: output, shape index: {}]
  %s3 = sld [smem:[#allocation0]]
  $region34: #{tpu_custom_call.1} parent=0
    _
  %s5 = ssub.s32 1, %s3
  %s6 = scalar_select 0, %s5, %s3
  $region1: #{tpu_custom_call.1} parent=0
    #allocation3 [shape = 'u8[4096]{0}', space=vmem, size = 0x1000, scoped, tag = 'input window, operand 0, single buffered']
    #allocation4 [shape = 's32[1]{0}', space=sflag, size = 0x4, scoped, tag = 'scoped memory for tpu_custom_call.1']
    #allocation5 [shape = 's32[1]{0}', space=sflag, size = 0x4, scoped, tag = 'scoped memory for tpu_custom_call.1']
    #allocation6 [shape = 'u8[4096]{0}', space=vmem, size = 0x1000, scoped, tag = 'input window, operand 1, single buffered']
    #allocation7 [shape = 's32[1]{0}', space=sflag, size = 0x4, scoped, tag = 'scoped memory for tpu_custom_call.1']
    #allocation8 [shape = 'u8[512]{0}', space=vmem, size = 0x400, scoped, tag = 'output window, operand 0, single buffered']
    %7 = vsyncpa [#allocation4], 0
    %8 = vsyncpa [#allocation7], 0
    %9 = vsyncpa [#allocation5], 0
    // Predicated region
    $region2: #{tpu_custom_call.1} parent=1 // pred_check
      _
    $region3: #{tpu_custom_call.1} parent=1 // pred_check_branch
      %11 = sbr.rel (0) target = $region5
    $region4: #{tpu_custom_call.1} parent=1 // pred_region
      %s12 = sadd.s32 0, 0
      %14 = vsyncadd [#allocation4], 0
      %s15 = smul.addr %s12, 8
      %s16 = scalar_lea.hbm %s0, %s15
      %s18 = sshll.u32 %s16, 4
      %s19 = int_to_ptr.hbm [resolvable:$true] %s18
      %s20 = sshll.u32 [#allocation3], 4
      %s21 = int_to_ptr.vmem [resolvable:$true] %s20
      %23 = dma.hbm_to_vmem [thread:$0]  %s19, 128, %s21, [#allocation4]
    $region5: #{tpu_custom_call.1} parent=1 // pred_fallthru
      _
    // Predicated region
    $region6: #{tpu_custom_call.1} parent=1 // pred_check
      _
    $region7: #{tpu_custom_call.1} parent=1 // pred_check_branch
      %25 = sbr.rel (0) target = $region9
    $region8: #{tpu_custom_call.1} parent=1 // pred_region
      %s26 = sadd.s32 0, 0
      %28 = vsyncadd [#allocation7], 0
      %s29 = smul.addr %s26, 8
      %s30 = scalar_lea.hbm %s1, %s29
      %s32 = sshll.u32 %s30, 4
      %s33 = int_to_ptr.hbm [resolvable:$true] %s32
      %s34 = sshll.u32 [#allocation6], 4
      %s35 = int_to_ptr.vmem [resolvable:$true] %s34
      %37 = dma.hbm_to_vmem [thread:$0]  %s33, 128, %s35, [#allocation7]
    $region9: #{tpu_custom_call.1} parent=1 // pred_fallthru
      _
    // Predicated region
    $region10: #{tpu_custom_call.1} parent=1 // pred_check
      _
    $region11: #{tpu_custom_call.1} parent=1 // pred_check_branch
      %39 = sbr.rel (0) target = $region13
    $region12: #{tpu_custom_call.1} parent=1 // pred_region
      %41 = dma.done [#allocation4], 128
    $region13: #{tpu_custom_call.1} parent=1 // pred_fallthru
      _
    // Predicated region
    $region14: #{tpu_custom_call.1} parent=1 // pred_check
      _
    $region15: #{tpu_custom_call.1} parent=1 // pred_check_branch
      %43 = sbr.rel (0) target = $region17
    $region16: #{tpu_custom_call.1} parent=1 // pred_region
      %45 = dma.done [#allocation7], 128
    $region17: #{tpu_custom_call.1} parent=1 // pred_fallthru
      _
    %s46 = sadd.s32 0, 0
    %s47 = sadd.s32 0, 0
    %p48 = scmp.eq.s32.totalorder 0, 0
    // Predicated region
    $region18: #{tpu_custom_call.1} parent=1 // pred_check
      %p49 = pneg %p48
    $region19: #{tpu_custom_call.1} parent=1 // pred_check_branch
      %51 = sbr.rel (%p49) target = $region21
    $region20: #{tpu_custom_call.1} parent=1 // pred_region
      %52 = vst [vmem:[#allocation2] sm:$0xff] 0.0
    $region21: #{tpu_custom_call.1} parent=1 // pred_fallthru
      _
    %v53 = vld [vmem:[#allocation3] sm:$0xff]
    %v54 = vld [vmem:[#allocation6] sm:$0xff]
    %v55 = vadd.f32 %v53, 0.3
    %v56 = vsub.f32 0.0, %v55
    %v57 = vmul.f32 %v56, %v54
    %v58 = vmax.f32 %v57, 0.0
    %v59 = vand.u32 2147483647, %v57
    %v60 = vsub.f32 0.0, %v59
    %v61 = vmul.f32 %v60, 1.442695
    %v62 = vpow.pop %v61
    %v63 = vadd.f32 %v62, 1.0
    %v64 = vlog2.pop %v63
    %v65 = vmul.f32 %v64, 0.6931472
    %v66 = vadd.f32 %v58, %v65
    %v67 = vld [vmem:[#allocation2] sm:$0xff]
    %v68 = vadd.f32 %v67, %v66
    %69 = vst [vmem:[#allocation2] sm:$0xff] %v68
    // Predicated region
    $region22: #{tpu_custom_call.1} parent=1 // pred_check
      %p70 = pneg %p48
    $region23: #{tpu_custom_call.1} parent=1 // pred_check_branch
      %72 = sbr.rel (%p70) target = $region25
    $region24: #{tpu_custom_call.1} parent=1 // pred_region
      %v73 = vld [vmem:[#allocation2] sm:$0xff]
      %74 = vadd.xlane.f32.xlu0 %v73
      %v75 = vpop.xlane.xlu0 %74
      %v76 = vrot.slane %v75, 4
      %v77 = vadd.f32 %v75, %v76
      %v78 = vrot.slane %v77, 2
      %v79 = vadd.f32 %v77, %v78
      %v80 = vrot.slane %v79, 1
      %v81 = vadd.f32 %v79, %v80
      %s82 = vtos %v81
      %s83 = smul.f32 %s82, 0.0078125
      %v84 = vstv %s83
      %vm85 = vcmask 0
      %86 = vst.msk [vmem:[#allocation8] sm:$0x1] %vm85, %v84
    $region25: #{tpu_custom_call.1} parent=1 // pred_fallthru
      _
    // Predicated region
    $region26: #{tpu_custom_call.1} parent=1 // pred_check
      _
    $region27: #{tpu_custom_call.1} parent=1 // pred_check_branch
      %88 = sbr.rel (0) target = $region29
    $region28: #{tpu_custom_call.1} parent=1 // pred_region
      %90 = vsyncadd [#allocation5], 0
      %s92 = sshll.u32 [#allocation8], 4
      %s93 = int_to_ptr.vmem [resolvable:$true] %s92
      %s94 = sshll.u32 %s2, 4
      %s95 = int_to_ptr.hbm [resolvable:$true] %s94
      %97 = dma.vmem_to_hbm [thread:$0]  %s93, 16, %s95, [#allocation5]
    $region29: #{tpu_custom_call.1} parent=1 // pred_fallthru
      _
    // Predicated region
    $region30: #{tpu_custom_call.1} parent=1 // pred_check
      _
    $region31: #{tpu_custom_call.1} parent=1 // pred_check_branch
      %99 = sbr.rel (0) target = $region33
    $region32: #{tpu_custom_call.1} parent=1 // pred_region
      %101 = dma.done [#allocation5], 16
    $region33: #{tpu_custom_call.1} parent=1 // pred_fallthru
      _
    %102 = vsyncpa [#allocation4], 1
    %103 = vsyncpa [#allocation7], 1
    %104 = vsyncpa [#allocation5], 1

</llo_original>
